<compile_context>
chip_gen: v5e
topology: v5e:2x2
jax: 0.10.0
libtpu: 0.0.40
codegen_flags: <defaults>
</compile_context>

<pallas_src>
import jax
import jax.numpy as jnp
from jax.experimental import pallas as pl
from jax.experimental.pallas import tpu as pltpu


def _round_up(n: int, m: int) -> int:
    return (n + m - 1) // m * m


def _cdiv(a: int, b: int) -> int:
    return (a + b - 1) // b


def linreg2_kernel(x_ref, w1_ref, b1_ref, w2_ref, b2_ref, o_ref):
    # fc1 on the MXU: cast x at the operand (in-kernel cast, no wrapper copy).
    h = jnp.dot(x_ref[...].astype(jnp.bfloat16), w1_ref[...],
                preferred_element_type=jnp.float32)
    # Bias + ReLU in f32 on the VPU (v5e-safe: no bf16 elementwise path there).
    h = jnp.maximum(h + b1_ref[...], 0.0)                  # (TB,Hp) + (1,Hp)
    # fc2 on the MXU with a lane-dense N tile, then bias add in f32.
    out = jnp.dot(h.astype(jnp.bfloat16), w2_ref[...],
                  preferred_element_type=jnp.float32)
    o = o_ref.shape[1]
    # Store only the real output columns (kills padded-lane writeback).
    o_ref[...] = (out + b2_ref[...])[:, :o].astype(o_ref.dtype)


def prepare_params(w1, b1, w2, b2):
    """One-time: zero-pad hidden/output weight dims to 128 lanes, bf16 weights,
    f32 biases."""
    K, H = w1.shape
    H2, O = w2.shape
    assert H == H2
    Hp = _round_up(H, 128)
    Op = _round_up(O, 128)
    w1p = jnp.pad(w1, ((0, 0), (0, Hp - H))).astype(jnp.bfloat16)
    b1p = jnp.pad(jnp.reshape(b1, (1, H)), ((0, 0), (0, Hp - H))).astype(jnp.float32)
    w2p = jnp.pad(w2, ((0, Hp - H), (0, Op - O))).astype(jnp.bfloat16)
    b2p = jnp.pad(jnp.reshape(b2, (1, O)), ((0, 0), (0, Op - O))).astype(jnp.float32)
    return w1p, b1p, w2p, b2p


def _vmem_estimate(tb, K, Hp, Op, O):
    # double-buffered x/out tiles + resident weights/biases + f32 temporaries
    return (2 * (tb * K * 4 + tb * O * 4)
            + K * Hp * 2 + Hp * Op * 2 + Hp * 4 + Op * 4
            + tb * Hp * 4 + tb * Op * 4)


def _choose_tiling(B, K, Hp, Op, O, cap=1024, vmem_budget=24 * 1024 * 1024):
    """Pick (TB, Bp, n_steps) so that: TB is a sublane multiple, padding is at
    most a few rows, the grid has >=2 steps for large batches (v7x 2-TC
    sharding), and the per-step VMEM working set fits all generations."""
    Bp8 = _round_up(max(B, 1), 8)
    n = _cdiv(Bp8, cap)          # minimum steps so TB <= cap
    if Bp8 >= 512:
        n = max(n, 2)            # >=2 grid steps so both v7x TensorCores work
    while True:
        TB = _round_up(_cdiv(Bp8, n), 8)
        if _vmem_estimate(TB, K, Hp, Op, O) <= vmem_budget or TB <= 8:
            break
        n += 1
    Bp = n * TB
    return TB, Bp, n, _vmem_estimate(TB, K, Hp, Op, O)


def linreg2_forward(x, w1p, b1p, w2p, b2p, output_size, *, max_batch_tile=1024):
    B, K = x.shape
    Hp = w1p.shape[1]
    Op = w2p.shape[1]
    O = int(output_size)

    TB, Bp, n_steps, vmem_est = _choose_tiling(B, K, Hp, Op, O, cap=max_batch_tile)

    # Only materialize a padded copy of x when the tiling actually requires it.
    x_in = x if Bp == B else jnp.pad(x, ((0, Bp - B), (0, 0)))

    flops = 2 * Bp * (K * Hp + Hp * Op)
    bytes_accessed = (Bp * K * x.dtype.itemsize
                      + w1p.size * 2 + w2p.size * 2
                      + b1p.size * 4 + b2p.size * 4
                      + Bp * O * 4)

    # Explicit scoped-VMEM limit only when we get near v5e's 16 MiB default.
    vmem_limit = None
    if vmem_est > 12 * 1024 * 1024:
        vmem_limit = min(int(2 * vmem_est), 48 * 1024 * 1024)

    out = pl.pallas_call(
        linreg2_kernel,
        out_shape=jax.ShapeDtypeStruct((Bp, O), jnp.float32),
        grid_spec=pltpu.PrefetchScalarGridSpec(
            num_scalar_prefetch=0,
            grid=(n_steps,),
            in_specs=[
                pl.BlockSpec((TB, K), lambda i: (i, 0)),   # x: tiled over batch
                pl.BlockSpec((K, Hp), lambda i: (0, 0)),   # w1: VMEM-resident
                pl.BlockSpec((1, Hp), lambda i: (0, 0)),   # b1: VMEM-resident
                pl.BlockSpec((Hp, Op), lambda i: (0, 0)),  # w2: VMEM-resident
                pl.BlockSpec((1, Op), lambda i: (0, 0)),   # b2: VMEM-resident
            ],
            out_specs=pl.BlockSpec((TB, O), lambda i: (i, 0)),
        ),
        compiler_params=pltpu.CompilerParams(
            dimension_semantics=("parallel",),
            vmem_limit_bytes=vmem_limit),
        cost_estimate=pl.CostEstimate(
            flops=flops, transcendentals=0, bytes_accessed=bytes_accessed),
    )(x_in, w1p, b1p, w2p, b2p)

    return out if Bp == B else out[:B]


def init_params(key, input_size, hidden_size, output_size, dtype=jnp.float32):
    # Deterministic init mimicking nn.Linear: U(-1/sqrt(fan_in), 1/sqrt(fan_in)).
    k1, k2, k3, k4 = jax.random.split(key, 4)
    bound1 = 1.0 / jnp.sqrt(input_size)
    bound2 = 1.0 / jnp.sqrt(hidden_size)
    w1 = jax.random.uniform(k1, (input_size, hidden_size), dtype, -bound1, bound1)
    b1 = jax.random.uniform(k2, (1, hidden_size), dtype, -bound1, bound1)
    w2 = jax.random.uniform(k3, (hidden_size, output_size), dtype, -bound2, bound2)
    b2 = jax.random.uniform(k4, (1, output_size), dtype, -bound2, bound2)
    return w1, b1, w2, b2


if __name__ == "__main__":
    input_size, hidden_size, output_size = 32, 64, 16
    batch = 8

    key = jax.random.PRNGKey(0)
    kx, kp = jax.random.split(key)
    x = jax.random.normal(kx, (batch, input_size), jnp.float32)
    w1, b1, w2, b2 = init_params(kp, input_size, hidden_size, output_size)

    # One-time param padding / bf16 cast (would live at model-init time).
    w1p, b1p, w2p, b2p = prepare_params(w1, b1, w2, b2)

    fwd = jax.jit(lambda xx: linreg2_forward(xx, w1p, b1p, w2p, b2p, output_size))
    out = fwd(x)
    jax.block_until_ready(out)
    assert out.shape == (batch, output_size)

    # Tight reference: mirror the kernel's bf16-in / f32-accumulate arithmetic.
    hp = jax.lax.Precision.HIGHEST
    x_bf = x.astype(jnp.bfloat16).astype(jnp.float32)
    w1_bf = w1.astype(jnp.bfloat16).astype(jnp.float32)
    w2_bf = w2.astype(jnp.bfloat16).astype(jnp.float32)
    h_ref = jnp.maximum(jnp.dot(x_bf, w1_bf, precision=hp) + b1, 0.0)
    ref_bf16 = jnp.dot(h_ref.astype(jnp.bfloat16).astype(jnp.float32),
                       w2_bf, precision=hp) + b2
    assert jnp.allclose(out, ref_bf16, atol=2e-3, rtol=2e-3)

    # Loose sanity check against the pure-f32 module semantics.
    ref_f32 = jnp.maximum(jnp.dot(x, w1, precision=hp) + b1, 0.0) @ w2 + b2
    assert jnp.allclose(out, ref_f32, atol=5e-2, rtol=5e-2)

    print("KERNEL_OK")
</pallas_src>

<mosaic_0001>
module attributes {stable_mosaic.version = 11 : i64} {
  func.func @linreg2_kernel(%arg0: i32, %arg1: memref<8x32xf32, #tpu.memory_space<vmem>>, %arg2: memref<32x128xbf16, #tpu.memory_space<vmem>>, %arg3: memref<1x128xf32, #tpu.memory_space<vmem>>, %arg4: memref<128x128xbf16, #tpu.memory_space<vmem>>, %arg5: memref<1x128xf32, #tpu.memory_space<vmem>>, %arg6: memref<8x16xf32, #tpu.memory_space<vmem>>) attributes {dimension_semantics = [#tpu.dimension_semantics<parallel>], iteration_bounds = array<i64: 1>, scalar_prefetch = 0 : i64, scratch_operands = 0 : i64, tpu.core_type = #tpu.core_type<tc>, window_params = [{transform_indices = @transform_0, window_bounds = array<i64: 8, 32>}, {pipeline_mode = #tpu.pipeline_mode<synchronous>, transform_indices = @transform_1, window_bounds = array<i64: 32, 128>}, {pipeline_mode = #tpu.pipeline_mode<synchronous>, transform_indices = @transform_2, window_bounds = array<i64: 1, 128>}, {pipeline_mode = #tpu.pipeline_mode<synchronous>, transform_indices = @transform_3, window_bounds = array<i64: 128, 128>}, {pipeline_mode = #tpu.pipeline_mode<synchronous>, transform_indices = @transform_4, window_bounds = array<i64: 1, 128>}, {transform_indices = @transform_5, window_bounds = array<i64: 8, 16>}]} {
    %c0 = arith.constant 0 : index
    %c0_0 = arith.constant 0 : index
    %0 = vector.load %arg1[%c0, %c0_0] : memref<8x32xf32, #tpu.memory_space<vmem>>, vector<8x32xf32>
    %1 = arith.truncf %0 : vector<8x32xf32> to vector<8x32xbf16>
    %c0_1 = arith.constant 0 : index
    %c0_2 = arith.constant 0 : index
    %2 = vector.load %arg2[%c0_1, %c0_2] : memref<32x128xbf16, #tpu.memory_space<vmem>>, vector<32x128xbf16>
    %cst = arith.constant dense<0.000000e+00> : vector<8x128xf32>
    %3 = tpu.matmul %1, %2, %cst {dimension_numbers = #tpu.dot_dimension_numbers<[1], [0], [0], [1], [0, 0, 1, 1], [], []>} : vector<8x32xbf16>, vector<32x128xbf16>, vector<8x128xf32> -> vector<8x128xf32>
    %c0_3 = arith.constant 0 : index
    %c0_4 = arith.constant 0 : index
    %4 = vector.load %arg3[%c0_3, %c0_4] : memref<1x128xf32, #tpu.memory_space<vmem>>, vector<1x128xf32>
    %5 = vector.broadcast %4 : vector<1x128xf32> to vector<8x128xf32>
    %6 = arith.addf %3, %5 : vector<8x128xf32>
    %cst_5 = arith.constant 0.000000e+00 : f32
    %7 = vector.broadcast %cst_5 : f32 to vector<8x128xf32>
    %8 = arith.maximumf %6, %7 : vector<8x128xf32>
    %9 = arith.truncf %8 : vector<8x128xf32> to vector<8x128xbf16>
    %c0_6 = arith.constant 0 : index
    %c0_7 = arith.constant 0 : index
    %10 = vector.load %arg4[%c0_6, %c0_7] : memref<128x128xbf16, #tpu.memory_space<vmem>>, vector<128x128xbf16>
    %cst_8 = arith.constant dense<0.000000e+00> : vector<8x128xf32>
    %11 = tpu.matmul %9, %10, %cst_8 {dimension_numbers = #tpu.dot_dimension_numbers<[1], [0], [0], [1], [0, 0, 1, 1], [], []>} : vector<8x128xbf16>, vector<128x128xbf16>, vector<8x128xf32> -> vector<8x128xf32>
    %c0_9 = arith.constant 0 : index
    %c0_10 = arith.constant 0 : index
    %12 = vector.load %arg5[%c0_9, %c0_10] : memref<1x128xf32, #tpu.memory_space<vmem>>, vector<1x128xf32>
    %13 = vector.broadcast %12 : vector<1x128xf32> to vector<8x128xf32>
    %14 = arith.addf %11, %13 : vector<8x128xf32>
    %15 = vector.extract_strided_slice %14 {offsets = [0, 0], sizes = [8, 16], strides = [1, 1]} : vector<8x128xf32> to vector<8x16xf32>
    %c0_11 = arith.constant 0 : index
    %c0_12 = arith.constant 0 : index
    %16 = vector.load %arg6[%c0_11, %c0_12] : memref<8x16xf32, #tpu.memory_space<vmem>>, vector<8x16xf32>
    tpu.vector_store %arg6[%c0_11, %c0_12], %15 {strides = array<i32>} : memref<8x16xf32, #tpu.memory_space<vmem>>, vector<8x16xf32>,
    return
  }
  func.func @transform_0(%arg0: i32) -> (i32, i32) {
    %c0_i32 = arith.constant 0 : i32
    %c0_i32_0 = arith.constant 0 : i32
    return %arg0, %c0_i32 : i32, i32
  }
  func.func @transform_1(%arg0: i32) -> (i32, i32) {
    %c0_i32 = arith.constant 0 : i32
    %c0_i32_0 = arith.constant 0 : i32
    %c0_i32_1 = arith.constant 0 : i32
    return %c0_i32, %c0_i32_0 : i32, i32
  }
  func.func @transform_2(%arg0: i32) -> (i32, i32) {
    %c0_i32 = arith.constant 0 : i32
    %c0_i32_0 = arith.constant 0 : i32
    %c0_i32_1 = arith.constant 0 : i32
    return %c0_i32, %c0_i32_0 : i32, i32
  }
  func.func @transform_3(%arg0: i32) -> (i32, i32) {
    %c0_i32 = arith.constant 0 : i32
    %c0_i32_0 = arith.constant 0 : i32
    %c0_i32_1 = arith.constant 0 : i32
    return %c0_i32, %c0_i32_0 : i32, i32
  }
  func.func @transform_4(%arg0: i32) -> (i32, i32) {
    %c0_i32 = arith.constant 0 : i32
    %c0_i32_0 = arith.constant 0 : i32
    %c0_i32_1 = arith.constant 0 : i32
    return %c0_i32, %c0_i32_0 : i32, i32
  }
  func.func @transform_5(%arg0: i32) -> (i32, i32) {
    %c0_i32 = arith.constant 0 : i32
    %c0_i32_0 = arith.constant 0 : i32
    return %arg0, %c0_i32 : i32, i32
  }
}

</mosaic_0001>

<llo_original>
// kernel: _lambda_.1
$region0: #{_lambda_.1}
  #allocation0 [shape = 'u32[]', space=smem, size = 0x4, offset = 0x4, fixed_abs, tag = 'smem constant byte address 0x4 - core index']
  #allocation1 [shape = 'u32[72,128]{1,0:T(1,128)}', space=vmem, size = 0x9000, scoped, tag = 'internal scratch']
  %s0 = inlined_call_operand.hbm [shape: f32[8,32], index: 0, kind: input, shape index: {}]
  %s1 = inlined_call_operand.hbm [shape: bf16[32,128], index: 1, kind: input, shape index: {}]
  %s2 = inlined_call_operand.hbm [shape: f32[1,128], index: 2, kind: input, shape index: {}]
  %s3 = inlined_call_operand.hbm [shape: bf16[128,128], index: 3, kind: input, shape index: {}]
  %s4 = inlined_call_operand.vmem [shape: f32[1,128], index: 4, kind: input, shape index: {}]
  %s5 = inlined_call_operand.hbm [shape: f32[8,16], index: 5, kind: output, shape index: {}]
  %s6 = sld [smem:[#allocation0]]
  $region46: #{_lambda_.1} parent=0
    _
  %s8 = ssub.s32 1, %s6
  %s9 = scalar_select 0, %s8, %s6
  $region1: #{_lambda_.1} parent=0
    #allocation2 [shape = 'u8[4096]{0}', space=vmem, size = 0x1000, scoped, tag = 'input window, operand 0, single buffered']
    #allocation3 [shape = 's32[1]{0}', space=sflag, size = 0x4, scoped, tag = 'scoped memory for _lambda_.1']
    #allocation4 [shape = 's32[1]{0}', space=sflag, size = 0x4, scoped, tag = 'scoped memory for _lambda_.1']
    #allocation5 [shape = 'u8[8192]{0}', space=vmem, size = 0x2000, scoped, tag = 'input window, operand 1, single buffered']
    #allocation6 [shape = 's32[1]{0}', space=sflag, size = 0x4, scoped, tag = 'scoped memory for _lambda_.1']
    #allocation7 [shape = 'u8[512]{0}', space=vmem, size = 0x400, scoped, tag = 'input window, operand 2, single buffered']
    #allocation8 [shape = 'u8[32768]{0}', space=vmem, size = 0x8000, scoped, tag = 'input window, operand 3, single buffered']
    #allocation9 [shape = 's32[1]{0}', space=sflag, size = 0x4, scoped, tag = 'scoped memory for _lambda_.1']
    #allocation10 [shape = 'u8[4096]{0}', space=vmem, size = 0x1000, scoped, tag = 'output window, operand 0, single buffered']
    %10 = vsyncpa [#allocation3], 0
    %11 = vsyncpa [#allocation6], 0
    %12 = vsyncpa [#allocation9], 0
    %13 = vsyncpa [#allocation4], 0
    // Predicated region
    $region2: #{_lambda_.1} parent=1 // pred_check
      _
    $region3: #{_lambda_.1} parent=1 // pred_check_branch
      %15 = sbr.rel (0) target = $region5
    $region4: #{_lambda_.1} parent=1 // pred_region
      %17 = vsyncadd [#allocation3], 0
      %s19 = sshll.u32 %s0, 4
      %s20 = int_to_ptr.hbm [resolvable:$true] %s19
      %s21 = sshll.u32 [#allocation2], 4
      %s22 = int_to_ptr.vmem [resolvable:$true] %s21
      %24 = dma.hbm_to_vmem [thread:$0]  %s20, 128, %s22, [#allocation3]
    $region5: #{_lambda_.1} parent=1 // pred_fallthru
      _
    // Predicated region
    $region6: #{_lambda_.1} parent=1 // pred_check
      _
    $region7: #{_lambda_.1} parent=1 // pred_check_branch
      %26 = sbr.rel (0) target = $region9
    $region8: #{_lambda_.1} parent=1 // pred_region
      %28 = vsyncadd [#allocation6], 0
      %s29 = sshll.u32 %s1, 4
      %s30 = int_to_ptr.hbm [resolvable:$true] %s29
      %s31 = sshll.u32 [#allocation5], 4
      %s32 = int_to_ptr.vmem [resolvable:$true] %s31
      %37 = dma.hbm_to_vmem [thread:$0]  %s30, 256, %s32, [#allocation6], 64, 64, 4
    $region9: #{_lambda_.1} parent=1 // pred_fallthru
      _
    // Predicated region
    $region10: #{_lambda_.1} parent=1 // pred_check
      _
    $region11: #{_lambda_.1} parent=1 // pred_check_branch
      %39 = sbr.rel (0) target = $region13
    $region12: #{_lambda_.1} parent=1 // pred_region
      %41 = vsyncadd [#allocation6], 0
      %s43 = sshll.u32 %s2, 4
      %s44 = int_to_ptr.hbm [resolvable:$true] %s43
      %s45 = sshll.u32 [#allocation7], 4
      %s46 = int_to_ptr.vmem [resolvable:$true] %s45
      %48 = dma.hbm_to_vmem [thread:$0]  %s44, 16, %s46, [#allocation6]
    $region13: #{_lambda_.1} parent=1 // pred_fallthru
      _
    // Predicated region
    $region14: #{_lambda_.1} parent=1 // pred_check
      _
    $region15: #{_lambda_.1} parent=1 // pred_check_branch
      %50 = sbr.rel (0) target = $region17
    $region16: #{_lambda_.1} parent=1 // pred_region
      %52 = vsyncadd [#allocation9], 0
      %s53 = sshll.u32 %s3, 4
      %s54 = int_to_ptr.hbm [resolvable:$true] %s53
      %s55 = sshll.u32 [#allocation8], 4
      %s56 = int_to_ptr.vmem [resolvable:$true] %s55
      %61 = dma.hbm_to_vmem [thread:$0]  %s54, 1024, %s56, [#allocation9], 64, 64, 4
    $region17: #{_lambda_.1} parent=1 // pred_fallthru
      _
    // Predicated region
    $region18: #{_lambda_.1} parent=1 // pred_check
      _
    $region19: #{_lambda_.1} parent=1 // pred_check_branch
      %63 = sbr.rel (0) target = $region21
    $region20: #{_lambda_.1} parent=1 // pred_region
      _
    $region21: #{_lambda_.1} parent=1 // pred_fallthru
      _
    // Predicated region
    $region22: #{_lambda_.1} parent=1 // pred_check
      _
    $region23: #{_lambda_.1} parent=1 // pred_check_branch
      %65 = sbr.rel (0) target = $region25
    $region24: #{_lambda_.1} parent=1 // pred_region
      %67 = dma.done [#allocation3], 128
    $region25: #{_lambda_.1} parent=1 // pred_fallthru
      _
    // Predicated region
    $region26: #{_lambda_.1} parent=1 // pred_check
      _
    $region27: #{_lambda_.1} parent=1 // pred_check_branch
      %69 = sbr.rel (0) target = $region29
    $region28: #{_lambda_.1} parent=1 // pred_region
      %71 = dma.done [#allocation6], 256
    $region29: #{_lambda_.1} parent=1 // pred_fallthru
      _
    // Predicated region
    $region30: #{_lambda_.1} parent=1 // pred_check
      _
    $region31: #{_lambda_.1} parent=1 // pred_check_branch
      %73 = sbr.rel (0) target = $region33
    $region32: #{_lambda_.1} parent=1 // pred_region
      %75 = dma.done [#allocation6], 16
    $region33: #{_lambda_.1} parent=1 // pred_fallthru
      _
    // Predicated region
    $region34: #{_lambda_.1} parent=1 // pred_check
      _
    $region35: #{_lambda_.1} parent=1 // pred_check_branch
      %77 = sbr.rel (0) target = $region37
    $region36: #{_lambda_.1} parent=1 // pred_region
      %79 = dma.done [#allocation9], 1024
    $region37: #{_lambda_.1} parent=1 // pred_fallthru
      _
    %v81 = vld [vmem:[#allocation2] sm:$0xff]
    %v82 = vpack.c.bf16 %v81, %v81
    %v83 = vld [vmem:[#allocation5] sm:$0xf]
    %v84 = vld [vmem:[#allocation5 + $0x4] sm:$0xf]
    %v85 = vld [vmem:[#allocation5 + $0x8] sm:$0xf]
    %v86 = vld [vmem:[#allocation5 + $0xc] sm:$0xf]
    %v87 = vld [vmem:[#allocation7] sm:$0x1]
    %v89 = vperm.slane %v87, 0
    %v95 = vunpack.c.l.b16 %v83
    %v96 = vunpack.c.l.b16 %v84
    %v97 = vunpack.c.l.b16 %v85
    %v98 = vunpack.c.l.b16 %v86
    %v99 = vpack.c.b16 %v96, %v95
    %v100 = vpack.c.b16 %v98, %v97
    %vm103 = vcmask 261120
    %v105 = vsel %vm103, %v82, 0
    %107 = vmatpush.bf16.msra.mxu0 0
    %108 = vmatpush.bf16.msra.mxu0 0
    %109 = vmatpush.bf16.msra.mxu0 0
    %110 = vmatpush.bf16.msra.mxu0 0
    %111 = vmatpush.bf16.msra.mxu0 0
    %112 = vmatpush.bf16.msra.mxu0 0
    %113 = vmatpush.bf16.msra.mxu0 %v100
    %114 = vmatpush.bf16.msra.mxu0 %v99
    %115 = vmatmul.bf16.gmra.mxu0 %v105
    %v116 = vpop.f32.mrf.mxu0
    %v117 = vadd.f32 %v89, %v116
    %v118 = vpop.f32.mrf.mxu0
    %119 = vdwg.mxu0
    %v120 = vmax.f32 %v117, 0.0
    %v121 = vpack.c.bf16 %v120, %v120
    %v122 = vld [vmem:[#allocation8] sm:$0xf]
    %v123 = vld [vmem:[#allocation8 + $0x4] sm:$0xf]
    %v124 = vld [vmem:[#allocation8 + $0x8] sm:$0xf]
    %v125 = vld [vmem:[#allocation8 + $0xc] sm:$0xf]
    %v126 = vld [vmem:[#allocation8 + $0x10] sm:$0xf]
    %v127 = vld [vmem:[#allocation8 + $0x14] sm:$0xf]
    %v128 = vld [vmem:[#allocation8 + $0x18] sm:$0xf]
    %v129 = vld [vmem:[#allocation8 + $0x1c] sm:$0xf]
    %v130 = vld [vmem:[#allocation8 + $0x20] sm:$0xf]
    %v131 = vld [vmem:[#allocation8 + $0x24] sm:$0xf]
    %v132 = vld [vmem:[#allocation8 + $0x28] sm:$0xf]
    %v133 = vld [vmem:[#allocation8 + $0x2c] sm:$0xf]
    %v134 = vld [vmem:[#allocation8 + $0x30] sm:$0xf]
    %v135 = vld [vmem:[#allocation8 + $0x34] sm:$0xf]
    %v136 = vld [vmem:[#allocation8 + $0x38] sm:$0xf]
    %v137 = vld [vmem:[#allocation8 + $0x3c] sm:$0xf]
    %v138 = vld [vmem:[%s4] sm:$0x1]
    %v140 = vperm.slane %v138, 0
    %v158 = vunpack.c.l.b16 %v122
    %v159 = vunpack.c.l.b16 %v123
    %v160 = vunpack.c.l.b16 %v124
    %v161 = vunpack.c.l.b16 %v125
    %v162 = vunpack.c.l.b16 %v126
    %v163 = vunpack.c.l.b16 %v127
    %v164 = vunpack.c.l.b16 %v128
    %v165 = vunpack.c.l.b16 %v129
    %v166 = vunpack.c.l.b16 %v130
    %v167 = vunpack.c.l.b16 %v131
    %v168 = vunpack.c.l.b16 %v132
    %v169 = vunpack.c.l.b16 %v133
    %v170 = vunpack.c.l.b16 %v134
    %v171 = vunpack.c.l.b16 %v135
    %v172 = vunpack.c.l.b16 %v136
    %v173 = vunpack.c.l.b16 %v137
    %v174 = vpack.c.b16 %v159, %v158
    %v175 = vpack.c.b16 %v161, %v160
    %v176 = vpack.c.b16 %v163, %v162
    %v177 = vpack.c.b16 %v165, %v164
    %v178 = vpack.c.b16 %v167, %v166
    %v179 = vpack.c.b16 %v169, %v168
    %v180 = vpack.c.b16 %v171, %v170
    %v181 = vpack.c.b16 %v173, %v172
    %190 = vmatpush.bf16.msra.mxu0 %v181
    %191 = vmatpush.bf16.msra.mxu0 %v180
    %192 = vmatpush.bf16.msra.mxu0 %v179
    %193 = vmatpush.bf16.msra.mxu0 %v178
    %194 = vmatpush.bf16.msra.mxu0 %v177
    %195 = vmatpush.bf16.msra.mxu0 %v176
    %196 = vmatpush.bf16.msra.mxu0 %v175
    %197 = vmatpush.bf16.msra.mxu0 %v174
    %198 = vmatmul.bf16.gmra.mxu0 %v121
    %v199 = vpop.f32.mrf.mxu0
    %v200 = vadd.f32 %v140, %v199
    %v201 = vpop.f32.mrf.mxu0
    %202 = vdwg.mxu0
    %vm203 = vcmask 130048
    %204 = vst.msk [vmem:[#allocation10] sm:$0xff] %vm203, %v200
    // Predicated region
    $region38: #{_lambda_.1} parent=1 // pred_check
      _
    $region39: #{_lambda_.1} parent=1 // pred_check_branch
      %206 = sbr.rel (0) target = $region41
    $region40: #{_lambda_.1} parent=1 // pred_region
      %208 = vsyncadd [#allocation4], 0
      %s210 = sshll.u32 [#allocation10], 4
      %s211 = int_to_ptr.vmem [resolvable:$true] %s210
      %s212 = sshll.u32 %s5, 4
      %s213 = int_to_ptr.hbm [resolvable:$true] %s212
      %215 = dma.vmem_to_hbm [thread:$0]  %s211, 128, %s213, [#allocation4]
    $region41: #{_lambda_.1} parent=1 // pred_fallthru
      _
    // Predicated region
    $region42: #{_lambda_.1} parent=1 // pred_check
      _
    $region43: #{_lambda_.1} parent=1 // pred_check_branch
      %217 = sbr.rel (0) target = $region45
    $region44: #{_lambda_.1} parent=1 // pred_region
      %219 = dma.done [#allocation4], 128
    $region45: #{_lambda_.1} parent=1 // pred_fallthru
      _
    %220 = vsyncpa [#allocation3], 1
    %221 = vsyncpa [#allocation6], 1
    %222 = vsyncpa [#allocation9], 1
    %223 = vsyncpa [#allocation4], 1

</llo_original>
